<compile_context>
chip_gen: v5e
topology: v5e:2x2
jax: 0.10.0
libtpu: 0.0.40
codegen_flags: <defaults>
</compile_context>

<pallas_src>
import jax
import jax.numpy as jnp
from jax.experimental import pallas as pl
from jax.experimental.pallas import tpu as pltpu

IN_DIM = 60      # 20 * 3
HID_DIM = 256
OUT_DIM = 100


def _globalnet_kernel(x_ref, w1_ref, b1_ref, w2_ref, b2_ref, o_ref):
    # Hoisted bias reads (each a single (1, N) f32 row, broadcast over the tile).
    b1 = b1_ref[...]                                     # (1, 256) f32
    b2 = b2_ref[...]                                     # (1, 100) f32

    # Cast x to bf16 in-kernel (VPU has slack; avoids a separate HBM pad/cast pass).
    x = x_ref[...].astype(jnp.bfloat16)                  # (tile_b, 60)

    # Layer 1: bf16 x bf16 -> f32 MXU accumulate, bias + ReLU in f32.
    h = jnp.dot(x, w1_ref[...], preferred_element_type=jnp.float32)
    h = jnp.maximum(h + b1, 0.0)                         # (tile_b, 256) f32

    # Layer 2: cast activations to bf16 for the MXU, accumulate in f32.
    y = jnp.dot(h.astype(jnp.bfloat16), w2_ref[...],
                preferred_element_type=jnp.float32)      # (tile_b, 100) f32
    o_ref[...] = jnp.maximum(y + b2, 0.0).astype(o_ref.dtype)


def prepare_params(w1, b1, w2, b2):
    """One-time cast/reshape of parameters (call once, reuse across forwards)."""
    return (w1.astype(jnp.bfloat16),                     # (60, 256)  bf16
            b1.astype(jnp.float32).reshape(1, HID_DIM),  # (1, 256)   f32
            w2.astype(jnp.bfloat16),                     # (256, 100) bf16
            b2.astype(jnp.float32).reshape(1, OUT_DIM))  # (1, 100)   f32


def globalnet_forward(joints, params, *, tile_b_cap=4096, out_dtype=jnp.float32):
    """joints: (B, 60) f32; params from prepare_params(); returns (B, 100) out_dtype."""
    w1b, b1f, w2b, b2f = params
    B, in_dim = joints.shape
    hid = w1b.shape[1]
    out_dim = w2b.shape[1]

    # Batch tiling: no padding of B. Aim for >= 2 grid steps (v7x megacore) while
    # keeping tile_b a multiple of 8 (sublane rule); tiny B uses tile_b == B
    # (block dim equal to the full array dim is always legal).
    if B <= 8:
        tile_b = B
    else:
        target = ((pl.cdiv(B, 2) + 7) // 8) * 8
        tile_b = max(8, min(tile_b_cap, target))
    grid = (pl.cdiv(B, tile_b),)

    flops = 2 * B * (in_dim * hid + hid * out_dim)
    bytes_accessed = (B * in_dim * joints.dtype.itemsize          # x read once
                      + B * out_dim * jnp.dtype(out_dtype).itemsize   # out written once
                      + (w1b.size + w2b.size) * 2                 # bf16 weights
                      + (b1f.size + b2f.size) * 4)                # f32 biases

    out = pl.pallas_call(
        _globalnet_kernel,
        out_shape=jax.ShapeDtypeStruct((B, out_dim), out_dtype),
        grid=grid,
        in_specs=[
            pl.BlockSpec((tile_b, in_dim), lambda i: (i, 0)),   # x: tiled over B
            pl.BlockSpec((in_dim, hid),    lambda i: (0, 0)),   # w1: VMEM-resident
            pl.BlockSpec((1, hid),         lambda i: (0, 0)),   # b1: resident
            pl.BlockSpec((hid, out_dim),   lambda i: (0, 0)),   # w2: resident
            pl.BlockSpec((1, out_dim),     lambda i: (0, 0)),   # b2: resident
        ],
        out_specs=pl.BlockSpec((tile_b, out_dim), lambda i: (i, 0)),
        compiler_params=pltpu.CompilerParams(
            dimension_semantics=("parallel",),
            vmem_limit_bytes=32 * 1024 * 1024),
        cost_estimate=pl.CostEstimate(
            flops=flops, transcendentals=0, bytes_accessed=bytes_accessed),
    )(joints, w1b, b1f, w2b, b2f)

    return out


def init_params(key):
    """Deterministic init mimicking nn.Linear's default U(-1/sqrt(fan_in), +1/sqrt(fan_in))."""
    k1, k2, k3, k4 = jax.random.split(key, 4)
    lim1 = 1.0 / jnp.sqrt(jnp.float32(IN_DIM))
    lim2 = 1.0 / jnp.sqrt(jnp.float32(HID_DIM))
    w1 = jax.random.uniform(k1, (IN_DIM, HID_DIM), jnp.float32, -lim1, lim1)
    b1 = jax.random.uniform(k2, (HID_DIM,), jnp.float32, -lim1, lim1)
    w2 = jax.random.uniform(k3, (HID_DIM, OUT_DIM), jnp.float32, -lim2, lim2)
    b2 = jax.random.uniform(k4, (OUT_DIM,), jnp.float32, -lim2, lim2)
    return w1, b1, w2, b2


if __name__ == "__main__":
    key = jax.random.PRNGKey(0)
    kx, kp = jax.random.split(key)
    B = 8
    joints = jax.random.normal(kx, (B, IN_DIM), jnp.float32)     # (8, 60)
    w1, b1, w2, b2 = init_params(kp)
    params = prepare_params(w1, b1, w2, b2)                      # one-time cast/pack

    y = globalnet_forward(joints, params)
    y = jax.block_until_ready(y)
    assert y.shape == (B, OUT_DIM)

    # Reference 1: bf16-emulated path (matches kernel numerics closely).
    xb = joints.astype(jnp.bfloat16)
    w1b = w1.astype(jnp.bfloat16)
    w2b = w2.astype(jnp.bfloat16)
    h_ref = jnp.maximum(
        jnp.dot(xb, w1b, preferred_element_type=jnp.float32) + b1, 0.0)
    ref_bf16 = jnp.maximum(
        jnp.dot(h_ref.astype(jnp.bfloat16), w2b,
                preferred_element_type=jnp.float32) + b2, 0.0)
    assert jnp.allclose(y, ref_bf16, atol=1e-2, rtol=1e-2)

    # Reference 2: full f32 path (looser tolerance, bf16 weights + f32 accumulate).
    ref_f32 = jnp.maximum(jnp.maximum(joints @ w1 + b1, 0.0) @ w2 + b2, 0.0)
    assert jnp.allclose(y, ref_f32, atol=5e-2, rtol=5e-2)

    print("KERNEL_OK")
</pallas_src>

<mosaic_0001>
module attributes {stable_mosaic.version = 11 : i64} {
  func.func @_globalnet_kernel(%arg0: i32, %arg1: memref<8x60xf32, #tpu.memory_space<vmem>>, %arg2: memref<60x256xbf16, #tpu.memory_space<vmem>>, %arg3: memref<1x256xf32, #tpu.memory_space<vmem>>, %arg4: memref<256x100xbf16, #tpu.memory_space<vmem>>, %arg5: memref<1x100xf32, #tpu.memory_space<vmem>>, %arg6: memref<8x100xf32, #tpu.memory_space<vmem>>) attributes {dimension_semantics = [#tpu.dimension_semantics<parallel>], iteration_bounds = array<i64: 1>, scalar_prefetch = 0 : i64, scratch_operands = 0 : i64, tpu.core_type = #tpu.core_type<tc>, window_params = [{transform_indices = @transform_0, window_bounds = array<i64: 8, 60>}, {pipeline_mode = #tpu.pipeline_mode<synchronous>, transform_indices = @transform_1, window_bounds = array<i64: 60, 256>}, {pipeline_mode = #tpu.pipeline_mode<synchronous>, transform_indices = @transform_2, window_bounds = array<i64: 1, 256>}, {pipeline_mode = #tpu.pipeline_mode<synchronous>, transform_indices = @transform_3, window_bounds = array<i64: 256, 100>}, {pipeline_mode = #tpu.pipeline_mode<synchronous>, transform_indices = @transform_4, window_bounds = array<i64: 1, 100>}, {transform_indices = @transform_5, window_bounds = array<i64: 8, 100>}]} {
    %c0 = arith.constant 0 : index
    %c0_0 = arith.constant 0 : index
    %0 = vector.load %arg3[%c0, %c0_0] : memref<1x256xf32, #tpu.memory_space<vmem>>, vector<1x256xf32>
    %c0_1 = arith.constant 0 : index
    %c0_2 = arith.constant 0 : index
    %1 = vector.load %arg5[%c0_1, %c0_2] : memref<1x100xf32, #tpu.memory_space<vmem>>, vector<1x100xf32>
    %c0_3 = arith.constant 0 : index
    %c0_4 = arith.constant 0 : index
    %2 = vector.load %arg1[%c0_3, %c0_4] : memref<8x60xf32, #tpu.memory_space<vmem>>, vector<8x60xf32>
    %3 = arith.truncf %2 : vector<8x60xf32> to vector<8x60xbf16>
    %c0_5 = arith.constant 0 : index
    %c0_6 = arith.constant 0 : index
    %4 = vector.load %arg2[%c0_5, %c0_6] : memref<60x256xbf16, #tpu.memory_space<vmem>>, vector<60x256xbf16>
    %cst = arith.constant dense<0.000000e+00> : vector<8x256xf32>
    %5 = tpu.matmul %3, %4, %cst {dimension_numbers = #tpu.dot_dimension_numbers<[1], [0], [0], [1], [0, 0, 1, 1], [], []>} : vector<8x60xbf16>, vector<60x256xbf16>, vector<8x256xf32> -> vector<8x256xf32>
    %6 = vector.broadcast %0 : vector<1x256xf32> to vector<8x256xf32>
    %7 = arith.addf %5, %6 : vector<8x256xf32>
    %cst_7 = arith.constant 0.000000e+00 : f32
    %8 = vector.broadcast %cst_7 : f32 to vector<8x256xf32>
    %9 = arith.maximumf %7, %8 : vector<8x256xf32>
    %10 = arith.truncf %9 : vector<8x256xf32> to vector<8x256xbf16>
    %c0_8 = arith.constant 0 : index
    %c0_9 = arith.constant 0 : index
    %11 = vector.load %arg4[%c0_8, %c0_9] : memref<256x100xbf16, #tpu.memory_space<vmem>>, vector<256x100xbf16>
    %cst_10 = arith.constant dense<0.000000e+00> : vector<8x100xf32>
    %12 = tpu.matmul %10, %11, %cst_10 {dimension_numbers = #tpu.dot_dimension_numbers<[1], [0], [0], [1], [0, 0, 1, 1], [], []>} : vector<8x256xbf16>, vector<256x100xbf16>, vector<8x100xf32> -> vector<8x100xf32>
    %13 = vector.broadcast %1 : vector<1x100xf32> to vector<8x100xf32>
    %14 = arith.addf %12, %13 : vector<8x100xf32>
    %cst_11 = arith.constant 0.000000e+00 : f32
    %15 = vector.broadcast %cst_11 : f32 to vector<8x100xf32>
    %16 = arith.maximumf %14, %15 : vector<8x100xf32>
    %c0_12 = arith.constant 0 : index
    %c0_13 = arith.constant 0 : index
    %17 = vector.load %arg6[%c0_12, %c0_13] : memref<8x100xf32, #tpu.memory_space<vmem>>, vector<8x100xf32>
    tpu.vector_store %arg6[%c0_12, %c0_13], %16 {strides = array<i32>} : memref<8x100xf32, #tpu.memory_space<vmem>>, vector<8x100xf32>,
    return
  }
  func.func @transform_0(%arg0: i32) -> (i32, i32) {
    %c0_i32 = arith.constant 0 : i32
    %c0_i32_0 = arith.constant 0 : i32
    return %arg0, %c0_i32 : i32, i32
  }
  func.func @transform_1(%arg0: i32) -> (i32, i32) {
    %c0_i32 = arith.constant 0 : i32
    %c0_i32_0 = arith.constant 0 : i32
    %c0_i32_1 = arith.constant 0 : i32
    return %c0_i32, %c0_i32_0 : i32, i32
  }
  func.func @transform_2(%arg0: i32) -> (i32, i32) {
    %c0_i32 = arith.constant 0 : i32
    %c0_i32_0 = arith.constant 0 : i32
    %c0_i32_1 = arith.constant 0 : i32
    return %c0_i32, %c0_i32_0 : i32, i32
  }
  func.func @transform_3(%arg0: i32) -> (i32, i32) {
    %c0_i32 = arith.constant 0 : i32
    %c0_i32_0 = arith.constant 0 : i32
    %c0_i32_1 = arith.constant 0 : i32
    return %c0_i32, %c0_i32_0 : i32, i32
  }
  func.func @transform_4(%arg0: i32) -> (i32, i32) {
    %c0_i32 = arith.constant 0 : i32
    %c0_i32_0 = arith.constant 0 : i32
    %c0_i32_1 = arith.constant 0 : i32
    return %c0_i32, %c0_i32_0 : i32, i32
  }
  func.func @transform_5(%arg0: i32) -> (i32, i32) {
    %c0_i32 = arith.constant 0 : i32
    %c0_i32_0 = arith.constant 0 : i32
    return %arg0, %c0_i32 : i32, i32
  }
}

</mosaic_0001>

<llo_original>
// kernel: tpu_custom_call.1
$region0: #{tpu_custom_call.1}
  #allocation0 [shape = 'u32[]', space=smem, size = 0x4, offset = 0x4, fixed_abs, tag = 'smem constant byte address 0x4 - core index']
  #allocation1 [shape = 'u32[72,128]{1,0:T(1,128)}', space=vmem, size = 0x9000, scoped, tag = 'internal scratch']
  %s0 = inlined_call_operand.vmem [shape: f32[8,60], index: 0, kind: input, shape index: {}]
  %s1 = inlined_call_operand.vmem [shape: bf16[60,256], index: 1, kind: input, shape index: {}]
  %s2 = inlined_call_operand.vmem [shape: f32[1,256], index: 2, kind: input, shape index: {}]
  %s3 = inlined_call_operand.vmem [shape: bf16[256,100], index: 3, kind: input, shape index: {}]
  %s4 = inlined_call_operand.vmem [shape: f32[1,100], index: 4, kind: input, shape index: {}]
  %s5 = inlined_call_operand.hbm [shape: f32[8,100], index: 5, kind: output, shape index: {}]
  %s6 = sld [smem:[#allocation0]]
  $region30: #{tpu_custom_call.1} parent=0
    _
  %s8 = ssub.s32 1, %s6
  %s9 = scalar_select 0, %s8, %s6
  $region1: #{tpu_custom_call.1} parent=0
    #allocation2 [shape = 'u8[4096]{0}', space=vmem, size = 0x1000, scoped, tag = 'output window, operand 0, single buffered']
    #allocation3 [shape = 's32[1]{0}', space=sflag, size = 0x4, scoped, tag = 'scoped memory for tpu_custom_call.1']
    %10 = vsyncpa [#allocation3], 0
    // Predicated region
    $region2: #{tpu_custom_call.1} parent=1 // pred_check
      _
    $region3: #{tpu_custom_call.1} parent=1 // pred_check_branch
      %12 = sbr.rel (0) target = $region5
    $region4: #{tpu_custom_call.1} parent=1 // pred_region
      _
    $region5: #{tpu_custom_call.1} parent=1 // pred_fallthru
      _
    // Predicated region
    $region6: #{tpu_custom_call.1} parent=1 // pred_check
      _
    $region7: #{tpu_custom_call.1} parent=1 // pred_check_branch
      %14 = sbr.rel (0) target = $region9
    $region8: #{tpu_custom_call.1} parent=1 // pred_region
      _
    $region9: #{tpu_custom_call.1} parent=1 // pred_fallthru
      _
    // Predicated region
    $region10: #{tpu_custom_call.1} parent=1 // pred_check
      _
    $region11: #{tpu_custom_call.1} parent=1 // pred_check_branch
      %16 = sbr.rel (0) target = $region13
    $region12: #{tpu_custom_call.1} parent=1 // pred_region
      _
    $region13: #{tpu_custom_call.1} parent=1 // pred_fallthru
      _
    // Predicated region
    $region14: #{tpu_custom_call.1} parent=1 // pred_check
      _
    $region15: #{tpu_custom_call.1} parent=1 // pred_check_branch
      %18 = sbr.rel (0) target = $region17
    $region16: #{tpu_custom_call.1} parent=1 // pred_region
      _
    $region17: #{tpu_custom_call.1} parent=1 // pred_fallthru
      _
    // Predicated region
    $region18: #{tpu_custom_call.1} parent=1 // pred_check
      _
    $region19: #{tpu_custom_call.1} parent=1 // pred_check_branch
      %20 = sbr.rel (0) target = $region21
    $region20: #{tpu_custom_call.1} parent=1 // pred_region
      _
    $region21: #{tpu_custom_call.1} parent=1 // pred_fallthru
      _
    %v22 = vld [vmem:[%s2] sm:$0x3]
    %v23 = vld [vmem:[%s4] sm:$0x1]
    %v24 = vld [vmem:[%s0] sm:$0xff]
    %v25 = vpack.c.bf16 %v24, %v24
    %v26 = vld [vmem:[%s1] sm:$0xff]
    %v27 = vld [vmem:[%s1 + $0x8] sm:$0xff]
    %v28 = vld [vmem:[%s1 + $0x10] sm:$0xff]
    %v29 = vld [vmem:[%s1 + $0x18] sm:$0xff]
    %v30 = vld [vmem:[%s1 + $0x20] sm:$0xff]
    %v31 = vld [vmem:[%s1 + $0x28] sm:$0xff]
    %v32 = vld [vmem:[%s1 + $0x30] sm:$0xff]
    %v33 = vld [vmem:[%s1 + $0x38] sm:$0x33]
    %v35 = vperm.slane %v22, 0
    %v36 = vperm.slane %v22, 1
    %v47 = vunpack.c.l.b16 %v26
    %v48 = vunpack.c.h.b16 %v26
    %v49 = vunpack.c.l.b16 %v27
    %v50 = vunpack.c.h.b16 %v27
    %v51 = vunpack.c.l.b16 %v28
    %v52 = vunpack.c.h.b16 %v28
    %v53 = vunpack.c.l.b16 %v29
    %v54 = vunpack.c.h.b16 %v29
    %v55 = vunpack.c.l.b16 %v30
    %v56 = vunpack.c.h.b16 %v30
    %v57 = vunpack.c.l.b16 %v31
    %v58 = vunpack.c.h.b16 %v31
    %v59 = vunpack.c.l.b16 %v32
    %v60 = vunpack.c.h.b16 %v32
    %v61 = vunpack.c.l.b16 %v33
    %v62 = vunpack.c.h.b16 %v33
    %v63 = vpack.c.b16 %v49, %v47
    %v64 = vpack.c.b16 %v50, %v48
    %v65 = vpack.c.b16 %v53, %v51
    %v66 = vpack.c.b16 %v54, %v52
    %v67 = vpack.c.b16 %v57, %v55
    %v68 = vpack.c.b16 %v58, %v56
    %v69 = vpack.c.b16 %v61, %v59
    %v70 = vpack.c.b16 %v62, %v60
    %vm77 = vcmask 490496
    %v79 = vsel %vm77, %v25, 0
    %vm81 = vcmask 1045504
    %v83 = vsel %vm81, %v69, 0
    %v86 = vsel %vm81, %v70, 0
    %88 = vmatpush.bf16.msra.mxu0 0
    %89 = vmatpush.bf16.msra.mxu0 0
    %90 = vmatpush.bf16.msra.mxu0 0
    %91 = vmatpush.bf16.msra.mxu0 0
    %92 = vmatpush.bf16.msra.mxu0 %v83
    %93 = vmatpush.bf16.msra.mxu0 %v67
    %94 = vmatpush.bf16.msra.mxu0 %v65
    %95 = vmatpush.bf16.msra.mxu0 %v63
    %96 = vmatmul.bf16.gmra.mxu0 %v79
    %v97 = vpop.f32.mrf.mxu0
    %v98 = vadd.f32 %v35, %v97
    %v99 = vpop.f32.mrf.mxu0
    %100 = vdwg.mxu0
    %101 = vmatpush.bf16.msra.mxu0 0
    %102 = vmatpush.bf16.msra.mxu0 0
    %103 = vmatpush.bf16.msra.mxu0 0
    %104 = vmatpush.bf16.msra.mxu0 0
    %105 = vmatpush.bf16.msra.mxu0 %v86
    %106 = vmatpush.bf16.msra.mxu0 %v68
    %107 = vmatpush.bf16.msra.mxu0 %v66
    %108 = vmatpush.bf16.msra.mxu0 %v64
    %109 = vmatmul.bf16.gmra.mxu0 %v79
    %v110 = vpop.f32.mrf.mxu0
    %v111 = vadd.f32 %v36, %v110
    %v112 = vpop.f32.mrf.mxu0
    %113 = vdwg.mxu0
    %v114 = vmax.f32 %v98, 0.0
    %v115 = vmax.f32 %v111, 0.0
    %v116 = vpack.c.bf16 %v114, %v114
    %v117 = vpack.c.bf16 %v115, %v115
    %v118 = vld [vmem:[%s3] sm:$0xf]
    %v119 = vld [vmem:[%s3 + $0x4] sm:$0xf]
    %v120 = vld [vmem:[%s3 + $0x8] sm:$0xf]
    %v121 = vld [vmem:[%s3 + $0xc] sm:$0xf]
    %v122 = vld [vmem:[%s3 + $0x10] sm:$0xf]
    %v123 = vld [vmem:[%s3 + $0x14] sm:$0xf]
    %v124 = vld [vmem:[%s3 + $0x18] sm:$0xf]
    %v125 = vld [vmem:[%s3 + $0x1c] sm:$0xf]
    %v126 = vld [vmem:[%s3 + $0x20] sm:$0xf]
    %v127 = vld [vmem:[%s3 + $0x24] sm:$0xf]
    %v128 = vld [vmem:[%s3 + $0x28] sm:$0xf]
    %v129 = vld [vmem:[%s3 + $0x2c] sm:$0xf]
    %v130 = vld [vmem:[%s3 + $0x30] sm:$0xf]
    %v131 = vld [vmem:[%s3 + $0x34] sm:$0xf]
    %v132 = vld [vmem:[%s3 + $0x38] sm:$0xf]
    %v133 = vld [vmem:[%s3 + $0x3c] sm:$0xf]
    %v134 = vld [vmem:[%s3 + $0x40] sm:$0xf]
    %v135 = vld [vmem:[%s3 + $0x44] sm:$0xf]
    %v136 = vld [vmem:[%s3 + $0x48] sm:$0xf]
    %v137 = vld [vmem:[%s3 + $0x4c] sm:$0xf]
    %v138 = vld [vmem:[%s3 + $0x50] sm:$0xf]
    %v139 = vld [vmem:[%s3 + $0x54] sm:$0xf]
    %v140 = vld [vmem:[%s3 + $0x58] sm:$0xf]
    %v141 = vld [vmem:[%s3 + $0x5c] sm:$0xf]
    %v142 = vld [vmem:[%s3 + $0x60] sm:$0xf]
    %v143 = vld [vmem:[%s3 + $0x64] sm:$0xf]
    %v144 = vld [vmem:[%s3 + $0x68] sm:$0xf]
    %v145 = vld [vmem:[%s3 + $0x6c] sm:$0xf]
    %v146 = vld [vmem:[%s3 + $0x70] sm:$0xf]
    %v147 = vld [vmem:[%s3 + $0x74] sm:$0xf]
    %v148 = vld [vmem:[%s3 + $0x78] sm:$0xf]
    %v149 = vld [vmem:[%s3 + $0x7c] sm:$0xf]
    %v151 = vperm.slane %v23, 0
    %v185 = vunpack.c.l.b16 %v118
    %v186 = vunpack.c.l.b16 %v119
    %v187 = vunpack.c.l.b16 %v120
    %v188 = vunpack.c.l.b16 %v121
    %v189 = vunpack.c.l.b16 %v122
    %v190 = vunpack.c.l.b16 %v123
    %v191 = vunpack.c.l.b16 %v124
    %v192 = vunpack.c.l.b16 %v125
    %v193 = vunpack.c.l.b16 %v126
    %v194 = vunpack.c.l.b16 %v127
    %v195 = vunpack.c.l.b16 %v128
    %v196 = vunpack.c.l.b16 %v129
    %v197 = vunpack.c.l.b16 %v130
    %v198 = vunpack.c.l.b16 %v131
    %v199 = vunpack.c.l.b16 %v132
    %v200 = vunpack.c.l.b16 %v133
    %v201 = vunpack.c.l.b16 %v134
    %v202 = vunpack.c.l.b16 %v135
    %v203 = vunpack.c.l.b16 %v136
    %v204 = vunpack.c.l.b16 %v137
    %v205 = vunpack.c.l.b16 %v138
    %v206 = vunpack.c.l.b16 %v139
    %v207 = vunpack.c.l.b16 %v140
    %v208 = vunpack.c.l.b16 %v141
    %v209 = vunpack.c.l.b16 %v142
    %v210 = vunpack.c.l.b16 %v143
    %v211 = vunpack.c.l.b16 %v144
    %v212 = vunpack.c.l.b16 %v145
    %v213 = vunpack.c.l.b16 %v146
    %v214 = vunpack.c.l.b16 %v147
    %v215 = vunpack.c.l.b16 %v148
    %v216 = vunpack.c.l.b16 %v149
    %v217 = vpack.c.b16 %v186, %v185
    %v218 = vpack.c.b16 %v188, %v187
    %v219 = vpack.c.b16 %v190, %v189
    %v220 = vpack.c.b16 %v192, %v191
    %v221 = vpack.c.b16 %v194, %v193
    %v222 = vpack.c.b16 %v196, %v195
    %v223 = vpack.c.b16 %v198, %v197
    %v224 = vpack.c.b16 %v200, %v199
    %v225 = vpack.c.b16 %v202, %v201
    %v226 = vpack.c.b16 %v204, %v203
    %v227 = vpack.c.b16 %v206, %v205
    %v228 = vpack.c.b16 %v208, %v207
    %v229 = vpack.c.b16 %v210, %v209
    %v230 = vpack.c.b16 %v212, %v211
    %v231 = vpack.c.b16 %v214, %v213
    %v232 = vpack.c.b16 %v216, %v215
    %249 = vmatpush.bf16.msra.mxu0 %v224
    %250 = vmatpush.bf16.msra.mxu0 %v223
    %251 = vmatpush.bf16.msra.mxu0 %v222
    %252 = vmatpush.bf16.msra.mxu0 %v221
    %253 = vmatpush.bf16.msra.mxu0 %v220
    %254 = vmatpush.bf16.msra.mxu0 %v219
    %255 = vmatpush.bf16.msra.mxu0 %v218
    %256 = vmatpush.bf16.msra.mxu0 %v217
    %257 = vmatmul.bf16.gmra.mxu0 %v116
    %v258 = vpop.f32.mrf.mxu0
    %v259 = vadd.f32 %v151, %v258
    %v260 = vpop.f32.mrf.mxu0
    %261 = vdwg.mxu0
    %262 = vmatpush.bf16.msra.mxu0 %v232
    %263 = vmatpush.bf16.msra.mxu0 %v231
    %264 = vmatpush.bf16.msra.mxu0 %v230
    %265 = vmatpush.bf16.msra.mxu0 %v229
    %266 = vmatpush.bf16.msra.mxu0 %v228
    %267 = vmatpush.bf16.msra.mxu0 %v227
    %268 = vmatpush.bf16.msra.mxu0 %v226
    %269 = vmatpush.bf16.msra.mxu0 %v225
    %270 = vmatmul.bf16.gmra.mxu0 %v117
    %v271 = vpop.f32.mrf.mxu0
    %v272 = vadd.f32 %v259, %v271
    %v273 = vpop.f32.mrf.mxu0
    %274 = vdwg.mxu0
    %v275 = vmax.f32 %v272, 0.0
    %vm276 = vcmask 818176
    %277 = vst.msk [vmem:[#allocation2] sm:$0xff] %vm276, %v275
    // Predicated region
    $region22: #{tpu_custom_call.1} parent=1 // pred_check
      _
    $region23: #{tpu_custom_call.1} parent=1 // pred_check_branch
      %279 = sbr.rel (0) target = $region25
    $region24: #{tpu_custom_call.1} parent=1 // pred_region
      %281 = vsyncadd [#allocation3], 0
      %s283 = sshll.u32 [#allocation2], 4
      %s284 = int_to_ptr.vmem [resolvable:$true] %s283
      %s285 = sshll.u32 %s5, 4
      %s286 = int_to_ptr.hbm [resolvable:$true] %s285
      %288 = dma.vmem_to_hbm [thread:$0]  %s284, 128, %s286, [#allocation3]
    $region25: #{tpu_custom_call.1} parent=1 // pred_fallthru
      _
    // Predicated region
    $region26: #{tpu_custom_call.1} parent=1 // pred_check
      _
    $region27: #{tpu_custom_call.1} parent=1 // pred_check_branch
      %290 = sbr.rel (0) target = $region29
    $region28: #{tpu_custom_call.1} parent=1 // pred_region
      %292 = dma.done [#allocation3], 128
    $region29: #{tpu_custom_call.1} parent=1 // pred_fallthru
      _
    %293 = vsyncpa [#allocation3], 1

</llo_original>
